<compile_context>
chip_gen: v7x
topology: tpu7x:2x2x1
jax: 0.10.0
libtpu: 0.0.40
codegen_flags: <defaults>
</compile_context>

<pallas_src>
import functools

import jax
import jax.numpy as jnp
from jax.experimental import pallas as pl
from jax.experimental.pallas import tpu as pltpu

_LANE = 128


# -----------------------------------------------------------------------------
# Pallas kernel: fused (conv1x1+BN) x2 -> relu -> (conv1x1+bias+BN) -> sigmoid
# -> gate multiply, on a channels-first (C, TM) tile of voxels.
# -----------------------------------------------------------------------------
def _attention_block_kernel(
    g_ref,      # (f_g, TM)   gating-signal tile (channels on sublanes)
    x_ref,      # (f_l, TM)   skip-connection tile
    wg_ref,     # (f_int, f_g)  BN-folded W_g conv weight (activation dtype)
    wx_ref,     # (f_int, f_l)  BN-folded W_x conv weight (activation dtype)
    b_ref,      # (f_int, 1)    combined BN shift (bg + bx), f32
    wpsi_ref,   # (f_int, 1)    BN-folded psi conv weight (column), f32
    bp_ref,     # (1,) SMEM     folded psi conv bias + BN shift, f32
    out_ref,    # (f_l, TM)
    *,
    s_total,    # true spatial extent S (static)
    ragged,     # static: does the last tile overrun S?
):
    # Two 1x1x1 convs (channel matmuls) on the native-dtype tiles, f32
    # accumulation on the MXU.  (For bit-parity with PyTorch's f32 Conv3d add
    # precision=jax.lax.Precision.HIGHEST — nearly free, kernel is HBM-bound.)
    a = jnp.dot(wg_ref[...], g_ref[...], preferred_element_type=jnp.float32)
    a = a + jnp.dot(wx_ref[...], x_ref[...], preferred_element_type=jnp.float32)
    a = jnp.maximum(a + b_ref[...], 0.0)                        # (f_int, TM) f32

    # psi projection (f_int -> 1): VPU multiply + sublane (XLU) reduction,
    # avoiding a degenerate 1-row MXU matmul; then sigmoid (EUP).
    p = jnp.sum(a * wpsi_ref[...], axis=0, keepdims=True)       # (1, TM)
    psi = jax.nn.sigmoid(p + bp_ref[0])                         # (1, TM)

    # Gate the skip connection (psi broadcast over the f_l sublanes).
    out = x_ref[...].astype(jnp.float32) * psi

    if ragged:
        # Defensive lane mask for the last (partial) tile: out-of-range lanes
        # of the input edge blocks are unspecified, so never let them reach
        # the store (Pallas masks the store to the array extent as well).
        tm = out_ref.shape[-1]
        lane = jax.lax.broadcasted_iota(jnp.int32, (1, tm), 1)
        out = jnp.where(pl.program_id(1) * tm + lane < s_total, out, 0.0)

    out_ref[...] = out.astype(out_ref.dtype)


# -----------------------------------------------------------------------------
# Wrapper helpers: BN folding, VMEM-budgeted / parallelism-aware tile choice.
# -----------------------------------------------------------------------------
def _fold_bn(gamma, beta, mean, var, eps=1e-5):
    """Fold eval-mode BatchNorm into per-channel (scale, shift)."""
    scale = gamma / jnp.sqrt(var + eps)
    shift = beta - mean * scale
    return scale, shift


def _round_up(a, b):
    return (a + b - 1) // b * b


def _vmem_footprint(tm, f_g, f_l, f_int, act_itemsize):
    """Approximate per-call VMEM need (bytes) at spatial tile width `tm`."""
    tiles = 2 * (f_g + 2 * f_l) * tm * act_itemsize       # double-buffered g/x/out
    interm = (f_int + 2) * tm * 4                          # f32 `a` + p/psi rows
    weights = 2 * (f_int * (f_g + f_l) + 2 * f_int) * 4    # (buffered) weight blocks
    return tiles + interm + weights


def _choose_tile(S, N, f_g, f_l, f_int, act_itemsize, tile_m,
                 vmem_budget=20 * (1 << 20), target_steps=8):
    """Pick the spatial (lane) tile: 128-multiple, VMEM-budgeted, and small
    enough that the grid has >= target_steps parallel steps (v7x has 2 TCs)."""
    if S <= _LANE:
        return S                                # single full-extent tile
    tm_cap = (S // _LANE) * _LANE               # largest 128-multiple <= S
    tm = min(_round_up(min(int(tile_m), tm_cap), _LANE), tm_cap)
    # (a) VMEM budget — safe under v5e's default scoped limit (raised below)
    #     and v7x's 64 MiB/TC physical VMEM at production channel widths.
    while tm > _LANE and _vmem_footprint(tm, f_g, f_l, f_int, act_itemsize) > vmem_budget:
        tm -= _LANE
    # (b) Enough grid steps to feed both v7x TensorCores / the DMA pipeline.
    tiles_needed = -(-target_steps // N)
    if pl.cdiv(S, tm) < tiles_needed:
        tm_par = max(_LANE, (S // tiles_needed // _LANE) * _LANE)
        tm = min(tm, tm_par)
    return tm


# -----------------------------------------------------------------------------
# Public entry point.
# -----------------------------------------------------------------------------
@functools.partial(jax.jit, static_argnames=("tile_m",))
def attention_block_pallas(g, x, params, *, tile_m=4096):
    """g: (N, f_g, D, H, W), x: (N, f_l, D, H, W) in NCDHW (PyTorch layout)."""
    N, f_g, D, H, W = g.shape
    _, f_l, _, _, _ = x.shape
    f_int = params["wg"].shape[0]          # conv weight: (f_int, f_g, 1, 1, 1)
    S = D * H * W
    act_dtype = x.dtype
    act_itemsize = jnp.dtype(act_dtype).itemsize

    # --- Fold conv weights + eval-mode BN into matmul weights / biases. -----
    wg = params["wg"].reshape(f_int, f_g)
    wx = params["wx"].reshape(f_int, f_l)
    wpsi = params["wpsi"].reshape(1, f_int)

    sg, bg = _fold_bn(params["bn_g_gamma"], params["bn_g_beta"],
                      params["bn_g_mean"], params["bn_g_var"])
    sx, bx = _fold_bn(params["bn_x_gamma"], params["bn_x_beta"],
                      params["bn_x_mean"], params["bn_x_var"])
    sp, bp_shift = _fold_bn(params["bn_p_gamma"], params["bn_p_beta"],
                            params["bn_p_mean"], params["bn_p_var"])

    wg_f = (wg * sg[:, None]).astype(act_dtype)                  # (f_int, f_g)
    wx_f = (wx * sx[:, None]).astype(act_dtype)                  # (f_int, f_l)
    b_f = (bg + bx).reshape(f_int, 1).astype(jnp.float32)        # combined shift
    wpsi_f = (wpsi * sp).reshape(f_int, 1).astype(jnp.float32)   # psi weight col
    bp_f = (params["bpsi"] * sp + bp_shift).reshape(1).astype(jnp.float32)

    # --- Channels-first voxel matrices: pure reshape, no pad / transpose. ---
    g3 = g.reshape(N, f_g, S)
    x3 = x.reshape(N, f_l, S)

    tm = _choose_tile(S, N, f_g, f_l, f_int, act_itemsize, tile_m)
    n_tiles = pl.cdiv(S, tm)
    ragged = (S % tm) != 0

    footprint = _vmem_footprint(tm, f_g, f_l, f_int, act_itemsize)
    # Explicit scoped-VMEM limit: above the footprint with headroom, >= 32 MiB,
    # and well under v7x's 64 MiB/TC physical VMEM.
    vmem_limit = int(min(max(footprint + (16 << 20), 32 << 20), 48 << 20))

    def tile_spec(c):
        # (squeezed batch dim, full channel dim, lane-dense spatial tile).
        return pl.BlockSpec((None, c, tm), lambda n, t: (n, 0, t))

    def weight_spec(r, c):
        # Constant-index block covering the whole (small) weight array.
        return pl.BlockSpec((r, c), lambda n, t: (0, 0))

    kernel = functools.partial(_attention_block_kernel, s_total=S, ragged=ragged)

    flops = 2 * N * S * f_int * (f_g + f_l + 1) + 6 * N * S
    bytes_accessed = (N * S * (f_g + 2 * f_l) * act_itemsize
                      + f_int * (f_g + f_l) * act_itemsize + 3 * f_int * 4)

    out3 = pl.pallas_call(
        kernel,
        out_shape=jax.ShapeDtypeStruct((N, f_l, S), act_dtype),
        grid_spec=pltpu.PrefetchScalarGridSpec(
            num_scalar_prefetch=0,
            grid=(N, n_tiles),
            in_specs=[
                tile_spec(f_g),                 # g tile   (f_g, tm)
                tile_spec(f_l),                 # x tile   (f_l, tm)
                weight_spec(f_int, f_g),        # wg_f
                weight_spec(f_int, f_l),        # wx_f
                weight_spec(f_int, 1),          # b_f
                weight_spec(f_int, 1),          # wpsi_f
                pl.BlockSpec(memory_space=pltpu.MemorySpace.SMEM),  # bp_f scalar
            ],
            out_specs=tile_spec(f_l),
        ),
        compiler_params=pltpu.CompilerParams(
            dimension_semantics=("parallel", "parallel"),
            vmem_limit_bytes=vmem_limit),
        cost_estimate=pl.CostEstimate(
            flops=int(flops),
            transcendentals=int(N * S),
            bytes_accessed=int(bytes_accessed)),
    )(g3, x3, wg_f, wx_f, b_f, wpsi_f, bp_f)

    return out3.reshape(N, f_l, D, H, W)


# -----------------------------------------------------------------------------
# Pure-JAX reference (eval-mode BN), for correctness checking.
# -----------------------------------------------------------------------------
def attention_block_ref(g, x, params):
    f_int = params["wg"].shape[0]
    wg_mat = params["wg"].reshape(f_int, -1)
    wx_mat = params["wx"].reshape(f_int, -1)
    wpsi_mat = params["wpsi"].reshape(1, f_int)

    def bn(y, gamma, beta, mean, var, eps=1e-5):
        s = gamma / jnp.sqrt(var + eps)
        return (y * s[None, :, None, None, None]
                + (beta - mean * s)[None, :, None, None, None])

    g1 = jnp.einsum("oc,ncdhw->nodhw", wg_mat, g)
    g1 = bn(g1, params["bn_g_gamma"], params["bn_g_beta"],
            params["bn_g_mean"], params["bn_g_var"])
    x1 = jnp.einsum("oc,ncdhw->nodhw", wx_mat, x)
    x1 = bn(x1, params["bn_x_gamma"], params["bn_x_beta"],
            params["bn_x_mean"], params["bn_x_var"])
    a = jnp.maximum(g1 + x1, 0.0)
    p = (jnp.einsum("oc,ncdhw->nodhw", wpsi_mat, a)
         + params["bpsi"][None, :, None, None, None])
    p = bn(p, params["bn_p_gamma"], params["bn_p_beta"],
           params["bn_p_mean"], params["bn_p_var"])
    psi = jax.nn.sigmoid(p)
    return x * psi


def make_params(key, f_g, f_l, f_int):
    ks = jax.random.split(key, 12)
    return {
        # Conv3d weights: (out_ch, in_ch, 1, 1, 1)
        "wg": jax.random.normal(ks[0], (f_int, f_g, 1, 1, 1), jnp.float32) * 0.3,
        "wx": jax.random.normal(ks[1], (f_int, f_l, 1, 1, 1), jnp.float32) * 0.3,
        "wpsi": jax.random.normal(ks[2], (1, f_int, 1, 1, 1), jnp.float32) * 0.3,
        "bpsi": jax.random.normal(ks[3], (1,), jnp.float32) * 0.1,
        # BatchNorm3d params + running stats (eval mode), made non-trivial.
        "bn_g_gamma": 1.0 + 0.1 * jax.random.normal(ks[4], (f_int,), jnp.float32),
        "bn_g_beta": 0.1 * jax.random.normal(ks[5], (f_int,), jnp.float32),
        "bn_g_mean": 0.1 * jax.random.normal(ks[6], (f_int,), jnp.float32),
        "bn_g_var": jnp.abs(jax.random.normal(ks[7], (f_int,), jnp.float32)) + 0.5,
        "bn_x_gamma": 1.0 + 0.1 * jax.random.normal(ks[8], (f_int,), jnp.float32),
        "bn_x_beta": 0.1 * jax.random.normal(ks[9], (f_int,), jnp.float32),
        "bn_x_mean": 0.1 * jax.random.normal(ks[10], (f_int,), jnp.float32),
        "bn_x_var": jnp.abs(jax.random.normal(ks[11], (f_int,), jnp.float32)) + 0.5,
        "bn_p_gamma": jnp.array([1.2], jnp.float32),
        "bn_p_beta": jnp.array([-0.05], jnp.float32),
        "bn_p_mean": jnp.array([0.03], jnp.float32),
        "bn_p_var": jnp.array([0.9], jnp.float32),
    }


if __name__ == "__main__":
    # Small V-Net-ish shapes: batch=2, f_g=f_l=4, f_int=8, spatial 8^3.
    N, f_g, f_l, f_int = 2, 4, 4, 8
    D = H = W = 8

    key = jax.random.PRNGKey(0)
    kg, kx, kp = jax.random.split(key, 3)
    g = jax.random.normal(kg, (N, f_g, D, H, W), jnp.float32)
    x = jax.random.normal(kx, (N, f_l, D, H, W), jnp.float32)
    params = make_params(kp, f_g, f_l, f_int)

    # f32, S divisible by 128.
    out = jax.block_until_ready(attention_block_pallas(g, x, params))
    ref = attention_block_ref(g, x, params)
    assert out.shape == x.shape
    assert jnp.allclose(out, ref, atol=1e-5, rtol=1e-5), "f32 mismatch vs reference"

    # f32 with a ragged spatial extent (S = 343): exercises the no-pad path
    # with a partial last tile and the in-kernel lane mask.
    D2 = H2 = W2 = 7
    g2 = jax.random.normal(kg, (N, f_g, D2, H2, W2), jnp.float32)
    x2 = jax.random.normal(kx, (N, f_l, D2, H2, W2), jnp.float32)
    out2 = jax.block_until_ready(attention_block_pallas(g2, x2, params, tile_m=256))
    ref2 = attention_block_ref(g2, x2, params)
    assert jnp.allclose(out2, ref2, atol=1e-5, rtol=1e-5), "ragged mismatch"

    # bf16 end-to-end (halved HBM traffic path).
    out_bf = jax.block_until_ready(
        attention_block_pallas(g.astype(jnp.bfloat16), x.astype(jnp.bfloat16), params))
    assert out_bf.dtype == jnp.bfloat16
    assert jnp.allclose(out_bf.astype(jnp.float32), ref, atol=1e-1, rtol=1e-1), \
        "bf16 mismatch vs reference"

    print("KERNEL_OK")
</pallas_src>

<mosaic_0001>
module attributes {stable_mosaic.version = 11 : i64} {
  func.func @_attention_block_kernel(%arg0: i32, %arg1: i32, %arg2: memref<1x4x128xf32, #tpu.memory_space<vmem>>, %arg3: memref<1x4x128xf32, #tpu.memory_space<vmem>>, %arg4: memref<8x4xf32, #tpu.memory_space<vmem>>, %arg5: memref<8x4xf32, #tpu.memory_space<vmem>>, %arg6: memref<8x1xf32, #tpu.memory_space<vmem>>, %arg7: memref<8x1xf32, #tpu.memory_space<vmem>>, %arg8: memref<1xf32, #tpu.memory_space<smem>>, %arg9: memref<1x4x128xf32, #tpu.memory_space<vmem>>) attributes {dimension_semantics = [#tpu.dimension_semantics<parallel>, #tpu.dimension_semantics<parallel>], iteration_bounds = array<i64: 2, 4>, scalar_prefetch = 0 : i64, scratch_operands = 0 : i64, tpu.core_type = #tpu.core_type<tc>, window_params = [{transform_indices = @transform_0, window_bounds = array<i64: 1, 4, 128>}, {transform_indices = @transform_1, window_bounds = array<i64: 1, 4, 128>}, {pipeline_mode = #tpu.pipeline_mode<synchronous>, transform_indices = @transform_2, window_bounds = array<i64: 8, 4>}, {pipeline_mode = #tpu.pipeline_mode<synchronous>, transform_indices = @transform_3, window_bounds = array<i64: 8, 4>}, {pipeline_mode = #tpu.pipeline_mode<synchronous>, transform_indices = @transform_4, window_bounds = array<i64: 8, 1>}, {pipeline_mode = #tpu.pipeline_mode<synchronous>, transform_indices = @transform_5, window_bounds = array<i64: 8, 1>}, {transform_indices = @transform_6, window_bounds = array<i64: 1>}, {transform_indices = @transform_7, window_bounds = array<i64: 1, 4, 128>}]} {
    %c0 = arith.constant 0 : index
    %c0_0 = arith.constant 0 : index
    %0 = vector.load %arg4[%c0, %c0_0] : memref<8x4xf32, #tpu.memory_space<vmem>>, vector<8x4xf32>
    %c0_1 = arith.constant 0 : index
    %c0_2 = arith.constant 0 : index
    %c0_3 = arith.constant 0 : index
    %1 = vector.load %arg2[%c0_1, %c0_2, %c0_3] : memref<1x4x128xf32, #tpu.memory_space<vmem>>, vector<1x4x128xf32>
    %2 = vector.shape_cast %1 : vector<1x4x128xf32> to vector<4x128xf32>
    %cst = arith.constant dense<0.000000e+00> : vector<8x128xf32>
    %3 = tpu.matmul %0, %2, %cst {dimension_numbers = #tpu.dot_dimension_numbers<[1], [0], [0], [1], [0, 0, 1, 1], [], []>} : vector<8x4xf32>, vector<4x128xf32>, vector<8x128xf32> -> vector<8x128xf32>
    %c0_4 = arith.constant 0 : index
    %c0_5 = arith.constant 0 : index
    %4 = vector.load %arg5[%c0_4, %c0_5] : memref<8x4xf32, #tpu.memory_space<vmem>>, vector<8x4xf32>
    %c0_6 = arith.constant 0 : index
    %c0_7 = arith.constant 0 : index
    %c0_8 = arith.constant 0 : index
    %5 = vector.load %arg3[%c0_6, %c0_7, %c0_8] : memref<1x4x128xf32, #tpu.memory_space<vmem>>, vector<1x4x128xf32>
    %6 = vector.shape_cast %5 : vector<1x4x128xf32> to vector<4x128xf32>
    %cst_9 = arith.constant dense<0.000000e+00> : vector<8x128xf32>
    %7 = tpu.matmul %4, %6, %cst_9 {dimension_numbers = #tpu.dot_dimension_numbers<[1], [0], [0], [1], [0, 0, 1, 1], [], []>} : vector<8x4xf32>, vector<4x128xf32>, vector<8x128xf32> -> vector<8x128xf32>
    %8 = arith.addf %3, %7 : vector<8x128xf32>
    %c0_10 = arith.constant 0 : index
    %c0_11 = arith.constant 0 : index
    %9 = vector.load %arg6[%c0_10, %c0_11] : memref<8x1xf32, #tpu.memory_space<vmem>>, vector<8x1xf32>
    %10 = vector.broadcast %9 : vector<8x1xf32> to vector<8x128xf32>
    %11 = arith.addf %8, %10 : vector<8x128xf32>
    %cst_12 = arith.constant 0.000000e+00 : f32
    %12 = vector.broadcast %cst_12 : f32 to vector<8x128xf32>
    %13 = arith.maximumf %11, %12 : vector<8x128xf32>
    %c0_13 = arith.constant 0 : index
    %c0_14 = arith.constant 0 : index
    %14 = vector.load %arg7[%c0_13, %c0_14] : memref<8x1xf32, #tpu.memory_space<vmem>>, vector<8x1xf32>
    %15 = vector.broadcast %14 : vector<8x1xf32> to vector<8x128xf32>
    %16 = arith.mulf %13, %15 : vector<8x128xf32>
    %cst_15 = arith.constant dense<0.000000e+00> : vector<128xf32>
    %17 = vector.multi_reduction <add>, %16, %cst_15 [0] : vector<8x128xf32> to vector<128xf32>
    %18 = vector.shape_cast %17 : vector<128xf32> to vector<1x128xf32>
    %c0_16 = arith.constant 0 : index
    %19 = memref.load %arg8[%c0_16] : memref<1xf32, #tpu.memory_space<smem>>
    %20 = vector.broadcast %19 : f32 to vector<1x128xf32>
    %21 = arith.addf %18, %20 : vector<1x128xf32>
    %22 = arith.negf %21 : vector<1x128xf32>
    %23 = math.exp %22 : vector<1x128xf32>
    %cst_17 = arith.constant 1.000000e+00 : f32
    %24 = vector.broadcast %cst_17 : f32 to vector<1x128xf32>
    %25 = arith.addf %24, %23 : vector<1x128xf32>
    %26 = arith.divf %24, %25 : vector<1x128xf32>
    %c0_18 = arith.constant 0 : index
    %c0_19 = arith.constant 0 : index
    %c0_20 = arith.constant 0 : index
    %27 = vector.load %arg3[%c0_18, %c0_19, %c0_20] : memref<1x4x128xf32, #tpu.memory_space<vmem>>, vector<1x4x128xf32>
    %28 = vector.shape_cast %27 : vector<1x4x128xf32> to vector<4x128xf32>
    %29 = vector.broadcast %26 : vector<1x128xf32> to vector<4x128xf32>
    %30 = arith.mulf %28, %29 : vector<4x128xf32>
    %c0_21 = arith.constant 0 : index
    %c0_22 = arith.constant 0 : index
    %c0_23 = arith.constant 0 : index
    %31 = vector.load %arg9[%c0_21, %c0_22, %c0_23] : memref<1x4x128xf32, #tpu.memory_space<vmem>>, vector<1x4x128xf32>
    %32 = vector.shape_cast %31 : vector<1x4x128xf32> to vector<4x128xf32>
    %33 = vector.shape_cast %30 : vector<4x128xf32> to vector<1x4x128xf32>
    tpu.vector_store %arg9[%c0_21, %c0_22, %c0_23], %33 {strides = array<i32>} : memref<1x4x128xf32, #tpu.memory_space<vmem>>, vector<1x4x128xf32>,
    return
  }
  func.func @transform_0(%arg0: i32, %arg1: i32) -> (i32, i32, i32) {
    %c0_i32 = arith.constant 0 : i32
    %c0_i32_0 = arith.constant 0 : i32
    return %arg0, %c0_i32, %arg1 : i32, i32, i32
  }
  func.func @transform_1(%arg0: i32, %arg1: i32) -> (i32, i32, i32) {
    %c0_i32 = arith.constant 0 : i32
    %c0_i32_0 = arith.constant 0 : i32
    return %arg0, %c0_i32, %arg1 : i32, i32, i32
  }
  func.func @transform_2(%arg0: i32, %arg1: i32) -> (i32, i32) {
    %c0_i32 = arith.constant 0 : i32
    %c0_i32_0 = arith.constant 0 : i32
    %c0_i32_1 = arith.constant 0 : i32
    return %c0_i32, %c0_i32_0 : i32, i32
  }
  func.func @transform_3(%arg0: i32, %arg1: i32) -> (i32, i32) {
    %c0_i32 = arith.constant 0 : i32
    %c0_i32_0 = arith.constant 0 : i32
    %c0_i32_1 = arith.constant 0 : i32
    return %c0_i32, %c0_i32_0 : i32, i32
  }
  func.func @transform_4(%arg0: i32, %arg1: i32) -> (i32, i32) {
    %c0_i32 = arith.constant 0 : i32
    %c0_i32_0 = arith.constant 0 : i32
    %c0_i32_1 = arith.constant 0 : i32
    return %c0_i32, %c0_i32_0 : i32, i32
  }
  func.func @transform_5(%arg0: i32, %arg1: i32) -> (i32, i32) {
    %c0_i32 = arith.constant 0 : i32
    %c0_i32_0 = arith.constant 0 : i32
    %c0_i32_1 = arith.constant 0 : i32
    return %c0_i32, %c0_i32_0 : i32, i32
  }
  func.func @transform_6(%arg0: i32, %arg1: i32) -> i32 {
    %c0_i32 = arith.constant 0 : i32
    %c0_i32_0 = arith.constant 0 : i32
    return %c0_i32 : i32
  }
  func.func @transform_7(%arg0: i32, %arg1: i32) -> (i32, i32, i32) {
    %c0_i32 = arith.constant 0 : i32
    %c0_i32_0 = arith.constant 0 : i32
    return %arg0, %c0_i32, %arg1 : i32, i32, i32
  }
}

</mosaic_0001>

<llo_original>
// kernel: attention_block_pallas.1
$region0: #{attention_block_pallas.1}
  #allocation0 [shape = 'u32[]', space=smem, size = 0x4, offset = 0x4, fixed_abs, tag = 'smem constant byte address 0x4 - core index']
  #allocation1 [shape = 'u32[144,128]{1,0:T(1,128)}', space=vmem, size = 0x12000, scoped, tag = 'internal scratch']
  #allocation2 [shape = 'f32[1]{0:T(128)S(6)}', space=smem, size = 0x200, scoped, tag = 'scoped memory for attention_block_pallas.1']
  %s0 = inlined_call_operand.vmem [shape: f32[2,4,512], index: 0, kind: input, shape index: {}]
  %s1 = inlined_call_operand.vmem [shape: f32[2,4,512], index: 1, kind: input, shape index: {}]
  %s2 = inlined_call_operand.vmem [shape: f32[8,4], index: 2, kind: input, shape index: {}]
  %s3 = inlined_call_operand.vmem [shape: f32[8,4], index: 3, kind: input, shape index: {}]
  %s4 = inlined_call_operand.vmem [shape: f32[8,1], index: 4, kind: input, shape index: {}]
  %s5 = inlined_call_operand.vmem [shape: f32[8,1], index: 5, kind: input, shape index: {}]
  %s6 = inlined_call_operand.<no memory space> [shape: f32[1], index: 6, kind: input, shape index: {}]
  %s7 = inlined_call_operand.vmem [shape: f32[2,4,512], index: 7, kind: output, shape index: {}]
  %s8 = sld [smem:[#allocation0]]
  $region61: #{attention_block_pallas.1} parent=0
    _
  %s10 = ssub.s32 1, %s8
  %s11 = scalar_select 0, %s10, %s8
  %12 = sst [smem:[#allocation2]] %s6
  loop: start=0, step=1, limit=10
  $region2: #{attention_block_pallas.1} parent=0 // loop_pre_header
    _
  $region3: #{attention_block_pallas.1} parent=0 // loop_header
    %s14 = sphi 0, %s18
    %p15 = scmp.ge.s32.totalorder %s14, 10
    %s21 = sphi 0, %s33
    %s22 = sphi 0, %s29
    %s23 = sphi 0, %s21
    %s24 = sphi 0, %s22
    %s25 = sphi 0, %s23
    %s26 = sphi 0, %s24
    %s38 = sphi 0, %s40
    %s41 = sphi 0, %s38
    %s42 = sphi 0, %s41
    %s58 = sphi 0, %s42
    %s66 = sphi 0, %s68
    %s69 = sphi 0, %s66
    %s70 = sphi 0, %s69
    %s86 = sphi 0, %s70
    %s90 = sphi 0, %s90
    %s92 = sphi 0, %s90
    %s93 = sphi 0, %s92
    %s107 = sphi 0, %s93
    %s111 = sphi 0, %s111
    %s113 = sphi 0, %s111
    %s114 = sphi 0, %s113
    %s128 = sphi 0, %s114
    %s132 = sphi 0, %s132
    %s134 = sphi 0, %s132
    %s135 = sphi 0, %s134
    %s149 = sphi 0, %s135
    %s153 = sphi 0, %s153
    %s155 = sphi 0, %s153
    %s156 = sphi 0, %s155
    %s170 = sphi 0, %s156
    %s174 = sphi 0, %s174
    %s176 = sphi 0, %s174
    %s177 = sphi 0, %s176
    %s191 = sphi 0, %s177
    %s199 = sphi 0, %s201
    %s202 = sphi 0, %s199
    %s203 = sphi 0, %s202
    %s219 = sphi 0, %s203
  $region4: #{attention_block_pallas.1} parent=0 // loop_header_branch
    %17 = sbr.rel (%p15) target = $region8
  $region5: #{attention_block_pallas.1} parent=0 // loop_body
    %s19 = ssub.s32 %s14, 1
    %s20 = ssub.s32 %s14, 2
    %s27 = sadd.s32 1, %s22
    %p28 = scmp.ge.s32.totalorder %s27, 4
    %s29 = scalar_select %p28, 0, %s27
    %s30 = sadd.s32 1, %s21
    %s31 = scalar_select %p28, %s30, %s21
    %p32 = scmp.ge.s32.totalorder %s31, 2
    %s33 = scalar_select %p32, 0, %s31
    %s34 = ssub.s32 %s21, %s33
    %s35 = ssub.s32 %s22, %s29
    %s36 = sor.u32 %s34, %s35
    %p37 = scmp.eq.s32.totalorder %s36, 0
    %s39 = sadd.s32 %s38, 1
    %s40 = scalar_select %p37, %s38, %s39
    %p43 = pneg %p37
    %p44 = scmp.eq.s32.totalorder %s14, 7
    %p45 = por %p43, %p44
    %p46 = scmp.ne.s32.totalorder %s38, %s41
    %p47 = scmp.eq.s32.totalorder %s14, 0
    %p48 = por %p46, %p47
    %p49 = scmp.ne.s32.totalorder %s38, %s41
    %p50 = scmp.eq.s32.totalorder %s19, 7
    %p51 = por %p49, %p50
    %p52 = scmp.ne.s32.totalorder %s41, %s42
    %p53 = scmp.eq.s32.totalorder %s19, 0
    %p54 = por %p52, %p53
    %p55 = scmp.ne.s32.totalorder %s41, %s42
    %p56 = scmp.eq.s32.totalorder %s20, 7
    %p57 = por %p55, %p56
    %p59 = scmp.ne.s32.totalorder %s42, %s58
    %p60 = scmp.eq.s32.totalorder %s20, 0
    %p61 = por %p59, %p60
    %s62 = ssub.s32 %s21, %s33
    %s63 = ssub.s32 %s22, %s29
    %s64 = sor.u32 %s62, %s63
    %p65 = scmp.eq.s32.totalorder %s64, 0
    %s67 = sadd.s32 %s66, 1
    %s68 = scalar_select %p65, %s66, %s67
    %p71 = pneg %p65
    %p72 = scmp.eq.s32.totalorder %s14, 7
    %p73 = por %p71, %p72
    %p74 = scmp.ne.s32.totalorder %s66, %s69
    %p75 = scmp.eq.s32.totalorder %s14, 0
    %p76 = por %p74, %p75
    %p77 = scmp.ne.s32.totalorder %s66, %s69
    %p78 = scmp.eq.s32.totalorder %s19, 7
    %p79 = por %p77, %p78
    %p80 = scmp.ne.s32.totalorder %s69, %s70
    %p81 = scmp.eq.s32.totalorder %s19, 0
    %p82 = por %p80, %p81
    %p83 = scmp.ne.s32.totalorder %s69, %s70
    %p84 = scmp.eq.s32.totalorder %s20, 7
    %p85 = por %p83, %p84
    %p87 = scmp.ne.s32.totalorder %s70, %s86
    %p88 = scmp.eq.s32.totalorder %s20, 0
    %p89 = por %p87, %p88
    %s91 = sadd.s32 %s90, 1
    %p94 = scmp.eq.s32.totalorder %s14, 7
    %p95 = scmp.ne.s32.totalorder %s90, %s92
    %p96 = scmp.eq.s32.totalorder %s14, 0
    %p97 = por %p95, %p96
    %p98 = scmp.ne.s32.totalorder %s90, %s92
    %p99 = scmp.eq.s32.totalorder %s19, 7
    %p100 = por %p98, %p99
    %p101 = scmp.ne.s32.totalorder %s92, %s93
    %p102 = scmp.eq.s32.totalorder %s19, 0
    %p103 = por %p101, %p102
    %p104 = scmp.ne.s32.totalorder %s92, %s93
    %p105 = scmp.eq.s32.totalorder %s20, 7
    %p106 = por %p104, %p105
    %p108 = scmp.ne.s32.totalorder %s93, %s107
    %p109 = scmp.eq.s32.totalorder %s20, 0
    %p110 = por %p108, %p109
    %s112 = sadd.s32 %s111, 1
    %p115 = scmp.eq.s32.totalorder %s14, 7
    %p116 = scmp.ne.s32.totalorder %s111, %s113
    %p117 = scmp.eq.s32.totalorder %s14, 0
    %p118 = por %p116, %p117
    %p119 = scmp.ne.s32.totalorder %s111, %s113
    %p120 = scmp.eq.s32.totalorder %s19, 7
    %p121 = por %p119, %p120
    %p122 = scmp.ne.s32.totalorder %s113, %s114
    %p123 = scmp.eq.s32.totalorder %s19, 0
    %p124 = por %p122, %p123
    %p125 = scmp.ne.s32.totalorder %s113, %s114
    %p126 = scmp.eq.s32.totalorder %s20, 7
    %p127 = por %p125, %p126
    %p129 = scmp.ne.s32.totalorder %s114, %s128
    %p130 = scmp.eq.s32.totalorder %s20, 0
    %p131 = por %p129, %p130
    %s133 = sadd.s32 %s132, 1
    %p136 = scmp.eq.s32.totalorder %s14, 7
    %p137 = scmp.ne.s32.totalorder %s132, %s134
    %p138 = scmp.eq.s32.totalorder %s14, 0
    %p139 = por %p137, %p138
    %p140 = scmp.ne.s32.totalorder %s132, %s134
    %p141 = scmp.eq.s32.totalorder %s19, 7
    %p142 = por %p140, %p141
    %p143 = scmp.ne.s32.totalorder %s134, %s135
    %p144 = scmp.eq.s32.totalorder %s19, 0
    %p145 = por %p143, %p144
    %p146 = scmp.ne.s32.totalorder %s134, %s135
    %p147 = scmp.eq.s32.totalorder %s20, 7
    %p148 = por %p146, %p147
    %p150 = scmp.ne.s32.totalorder %s135, %s149
    %p151 = scmp.eq.s32.totalorder %s20, 0
    %p152 = por %p150, %p151
    %s154 = sadd.s32 %s153, 1
    %p157 = scmp.eq.s32.totalorder %s14, 7
    %p158 = scmp.ne.s32.totalorder %s153, %s155
    %p159 = scmp.eq.s32.totalorder %s14, 0
    %p160 = por %p158, %p159
    %p161 = scmp.ne.s32.totalorder %s153, %s155
    %p162 = scmp.eq.s32.totalorder %s19, 7
    %p163 = por %p161, %p162
    %p164 = scmp.ne.s32.totalorder %s155, %s156
    %p165 = scmp.eq.s32.totalorder %s19, 0
    %p166 = por %p164, %p165
    %p167 = scmp.ne.s32.totalorder %s155, %s156
    %p168 = scmp.eq.s32.totalorder %s20, 7
    %p169 = por %p167, %p168
    %p171 = scmp.ne.s32.totalorder %s156, %s170
    %p172 = scmp.eq.s32.totalorder %s20, 0
    %p173 = por %p171, %p172
    %s175 = sadd.s32 %s174, 1
    %p178 = scmp.eq.s32.totalorder %s14, 7
    %p179 = scmp.ne.s32.totalorder %s174, %s176
    %p180 = scmp.eq.s32.totalorder %s14, 0
    %p181 = por %p179, %p180
    %p182 = scmp.ne.s32.totalorder %s174, %s176
    %p183 = scmp.eq.s32.totalorder %s19, 7
    %p184 = por %p182, %p183
    %p185 = scmp.ne.s32.totalorder %s176, %s177
    %p186 = scmp.eq.s32.totalorder %s19, 0
    %p187 = por %p185, %p186
    %p188 = scmp.ne.s32.totalorder %s176, %s177
    %p189 = scmp.eq.s32.totalorder %s20, 7
    %p190 = por %p188, %p189
    %p192 = scmp.ne.s32.totalorder %s177, %s191
    %p193 = scmp.eq.s32.totalorder %s20, 0
    %p194 = por %p192, %p193
    %s195 = ssub.s32 %s21, %s33
    %s196 = ssub.s32 %s22, %s29
    %s197 = sor.u32 %s195, %s196
    %p198 = scmp.eq.s32.totalorder %s197, 0
    %s200 = sadd.s32 %s199, 1
    %s201 = scalar_select %p198, %s199, %s200
    %p204 = pneg %p198
    %p205 = scmp.eq.s32.totalorder %s14, 7
    %p206 = por %p204, %p205
    %p207 = scmp.ne.s32.totalorder %s199, %s202
    %p208 = scmp.eq.s32.totalorder %s14, 0
    %p209 = por %p207, %p208
    %p210 = scmp.ne.s32.totalorder %s199, %s202
    %p211 = scmp.eq.s32.totalorder %s19, 7
    %p212 = por %p210, %p211
    %p213 = scmp.ne.s32.totalorder %s202, %s203
    %p214 = scmp.eq.s32.totalorder %s19, 0
    %p215 = por %p213, %p214
    %p216 = scmp.ne.s32.totalorder %s202, %s203
    %p217 = scmp.eq.s32.totalorder %s20, 7
    %p218 = por %p216, %p217
    %p220 = scmp.ne.s32.totalorder %s203, %s219
    %p221 = scmp.eq.s32.totalorder %s20, 0
    %p222 = por %p220, %p221
    %p223 = scmp.le.s32.totalorder 1, %s14
    %p224 = scmp.lt.s32.totalorder %s14, 9
    %p225 = pnand %p223, %p224
    %p226 = pneg %p225
    // Predicated region
    $region9: #{attention_block_pallas.1} parent=5 // pred_check
      _
    $region10: #{attention_block_pallas.1} parent=5 // pred_check_branch
      %228 = sbr.rel (%p225) target = $region12
    $region11: #{attention_block_pallas.1} parent=5 // pred_region
      %s229 = ssub.s32 %s14, 1
      // Predicated region
      $region13: #{attention_block_pallas.1} parent=11 // pred_check
        %p230 = pneg %p103
      $region14: #{attention_block_pallas.1} parent=11 // pred_check_branch
        %232 = sbr.rel (%p230) target = $region16
      $region15: #{attention_block_pallas.1} parent=11 // pred_region
        _
      $region16: #{attention_block_pallas.1} parent=11 // pred_fallthru
        _
      // Predicated region
      $region17: #{attention_block_pallas.1} parent=11 // pred_check
        %p233 = pneg %p124
      $region18: #{attention_block_pallas.1} parent=11 // pred_check_branch
        %235 = sbr.rel (%p233) target = $region20
      $region19: #{attention_block_pallas.1} parent=11 // pred_region
        _
      $region20: #{attention_block_pallas.1} parent=11 // pred_fallthru
        _
      // Predicated region
      $region21: #{attention_block_pallas.1} parent=11 // pred_check
        %p236 = pneg %p145
      $region22: #{attention_block_pallas.1} parent=11 // pred_check_branch
        %238 = sbr.rel (%p236) target = $region24
      $region23: #{attention_block_pallas.1} parent=11 // pred_region
        _
      $region24: #{attention_block_pallas.1} parent=11 // pred_fallthru
        _
      // Predicated region
      $region25: #{attention_block_pallas.1} parent=11 // pred_check
        %p239 = pneg %p166
      $region26: #{attention_block_pallas.1} parent=11 // pred_check_branch
        %241 = sbr.rel (%p239) target = $region28
      $region27: #{attention_block_pallas.1} parent=11 // pred_region
        _
      $region28: #{attention_block_pallas.1} parent=11 // pred_fallthru
        _
      // Predicated region
      $region29: #{attention_block_pallas.1} parent=11 // pred_check
        %p242 = pneg %p187
      $region30: #{attention_block_pallas.1} parent=11 // pred_check_branch
        %244 = sbr.rel (%p242) target = $region32
      $region31: #{attention_block_pallas.1} parent=11 // pred_region
        _
      $region32: #{attention_block_pallas.1} parent=11 // pred_fallthru
        _
    $region12: #{attention_block_pallas.1} parent=5 // pred_fallthru
      _
    %p245 = scmp.lt.s32.totalorder %s14, 8
    // Predicated region
    $region33: #{attention_block_pallas.1} parent=5 // pred_check
      %p246 = pneg %p245
    $region34: #{attention_block_pallas.1} parent=5 // pred_check_branch
      %248 = sbr.rel (%p246) target = $region36
    $region35: #{attention_block_pallas.1} parent=5 // pred_region
      // Predicated region
      $region37: #{attention_block_pallas.1} parent=35 // pred_check
        %p249 = pneg %p48
      $region38: #{attention_block_pallas.1} parent=35 // pred_check_branch
        %251 = sbr.rel (%p249) target = $region40
      $region39: #{attention_block_pallas.1} parent=35 // pred_region
        %p252 = scmp.lt.s32.totalorder %s21, 1
        %s253 = scalar_select %p252, %s21, 1
        %p254 = scmp.lt.s32.totalorder %s22, 3
        %s255 = scalar_select %p254, %s22, 3
        %s256 = smul.addr %s253, 4
        %s257 = sadd.s32 %s255, %s256
        %s258 = smul.addr %s257, 4
        %s259 = scalar_lea.vmem %s0, %s258
      $region40: #{attention_block_pallas.1} parent=35 // pred_fallthru
        _
      // Predicated region
      $region41: #{attention_block_pallas.1} parent=35 // pred_check
        %p260 = pneg %p76
      $region42: #{attention_block_pallas.1} parent=35 // pred_check_branch
        %262 = sbr.rel (%p260) target = $region44
      $region43: #{attention_block_pallas.1} parent=35 // pred_region
        %p263 = scmp.lt.s32.totalorder %s21, 1
        %s264 = scalar_select %p263, %s21, 1
        %p265 = scmp.lt.s32.totalorder %s22, 3
        %s266 = scalar_select %p265, %s22, 3
        %s267 = smul.addr %s264, 4
        %s268 = sadd.s32 %s266, %s267
        %s269 = smul.addr %s268, 4
        %s270 = scalar_lea.vmem %s1, %s269
      $region44: #{attention_block_pallas.1} parent=35 // pred_fallthru
        _
    $region36: #{attention_block_pallas.1} parent=5 // pred_fallthru
      _
    %p271 = scmp.le.s32.totalorder 1, %s14
    %p272 = scmp.lt.s32.totalorder %s14, 9
    %p273 = pnand %p271, %p272
    %p274 = pneg %p273
    // Predicated region
    $region45: #{attention_block_pallas.1} parent=5 // pred_check
      _
    $region46: #{attention_block_pallas.1} parent=5 // pred_check_branch
      %276 = sbr.rel (%p273) target = $region48
    $region47: #{attention_block_pallas.1} parent=5 // pred_region
      %s277 = ssub.s32 %s14, 1
      %p278 = scmp.lt.s32.totalorder %s23, 1
      %s279 = scalar_select %p278, %s23, 1
      %p280 = scmp.lt.s32.totalorder %s24, 3
      %s281 = scalar_select %p280, %s24, 3
      %s282 = smul.addr %s279, 4
      %s283 = sadd.s32 %s281, %s282
      %s284 = smul.addr %s283, 4
      %s285 = scalar_lea.vmem %s0, %s284
      %p286 = pneg %p54
      %p287 = pneg %p51
      %p288 = scmp.lt.s32.totalorder %s23, 1
      %s289 = scalar_select %p288, %s23, 1
      %p290 = scmp.lt.s32.totalorder %s24, 3
      %s291 = scalar_select %p290, %s24, 3
      %s292 = smul.addr %s289, 4
      %s293 = sadd.s32 %s291, %s292
      %s294 = smul.addr %s293, 4
      %s295 = scalar_lea.vmem %s1, %s294
      %p296 = pneg %p82
      %p297 = pneg %p79
      %p298 = pneg %p103
      %p299 = pneg %p100
      %p300 = pneg %p124
      %p301 = pneg %p121
      %p302 = pneg %p145
      %p303 = pneg %p142
      %p304 = pneg %p166
      %p305 = pneg %p163
      %p306 = pneg %p187
      %p307 = pneg %p184
      %p308 = pneg %p215
      %p309 = pneg %p212
      %p310 = scmp.lt.s32.totalorder %s23, 1
      %s311 = scalar_select %p310, %s23, 1
      %p312 = scmp.lt.s32.totalorder %s24, 3
      %s313 = scalar_select %p312, %s24, 3
      %s314 = smul.addr %s311, 4
      %s315 = sadd.s32 %s313, %s314
      %s316 = smul.addr %s315, 4
      %s317 = scalar_lea.vmem %s7, %s316
      %p318 = scmp.lt.s32.totalorder %s23, 1
      %s319 = scalar_select %p318, %s23, 1
      %p320 = scmp.lt.s32.totalorder %s24, 3
      %s321 = scalar_select %p320, %s24, 3
      %s322 = smul.addr %s319, 4
      %s323 = sadd.s32 %s321, %s322
      %s324 = smul.addr %s323, 4
      %s325 = scalar_lea.vmem %s0, %s324
      %p326 = scmp.lt.s32.totalorder %s23, 1
      %s327 = scalar_select %p326, %s23, 1
      %p328 = scmp.lt.s32.totalorder %s24, 3
      %s329 = scalar_select %p328, %s24, 3
      %s330 = smul.addr %s327, 4
      %s331 = sadd.s32 %s329, %s330
      %s332 = smul.addr %s331, 4
      %s333 = scalar_lea.vmem %s1, %s332
      %p334 = scmp.lt.s32.totalorder %s23, 1
      %s335 = scalar_select %p334, %s23, 1
      %p336 = scmp.lt.s32.totalorder %s24, 3
      %s337 = scalar_select %p336, %s24, 3
      %s338 = smul.addr %s335, 4
      %s339 = sadd.s32 %s337, %s338
      %s340 = smul.addr %s339, 4
      %s341 = scalar_lea.vmem %s7, %s340
      %v342 = vld [vmem:[%s2] sm:$0xff]
      %v343 = vld [vmem:[%s325] sm:$0xf]
      %v344 = vld [vmem:[%s3] sm:$0xff]
      %v345 = vld [vmem:[%s333] sm:$0xf]
      %vm346 = vcmask 31744
      %v348 = vsel %vm346, %v344, 0
      %vm350 = vcmask 1043456
      %v352 = vsel %vm350, %v345, 0
      %354 = vmatprep.subr.mxu0 0.0
      %355 = vmatpush1.msra.mxu0 %v352
      %356 = vmatprep.subr.mxu0 0.0
      %357 = vmatpush1.msra.mxu0 0.0
      %358 = vmatprep.subr.mxu0 0.0
      %359 = vmatpush1.msra.mxu0 0.0
      %360 = vmatprep.subr.mxu0 0.0
      %361 = vmatpush1.msra.mxu0 0.0
      %362 = vmatprep.subr.mxu0 0.0
      %363 = vmatpush1.msra.mxu0 0.0
      %364 = vmatprep.subr.mxu0 0.0
      %365 = vmatpush1.msra.mxu0 0.0
      %366 = vmatprep.subr.mxu0 0.0
      %367 = vmatpush1.msra.mxu0 0.0
      %368 = vmatprep.subr.mxu0 0.0
      %369 = vmatpush1.msra.mxu0 0.0
      %370 = vmatprep.subr.mxu0 0.0
      %371 = vmatpush1.msra.mxu0 0.0
      %372 = vmatprep.subr.mxu0 0.0
      %373 = vmatpush1.msra.mxu0 0.0
      %374 = vmatprep.subr.mxu0 0.0
      %375 = vmatpush1.msra.mxu0 0.0
      %376 = vmatprep.subr.mxu0 0.0
      %377 = vmatpush1.msra.mxu0 0.0
      %378 = vmatprep.subr.mxu0 0.0
      %379 = vmatpush1.msra.mxu0 0.0
      %380 = vmatprep.subr.mxu0 0.0
      %381 = vmatpush1.msra.mxu0 0.0
      %382 = vmatprep.subr.mxu0 0.0
      %383 = vmatpush1.msra.mxu0 0.0
      %384 = vmatprep.subr.mxu0 0.0
      %385 = vmatpush1.msra.mxu0 0.0
      %386 = vmatprep.subr.mxu0 0.0
      %387 = vmatpush1.msra.mxu0 0.0
      %388 = vmatprep.subr.mxu0 0.0
      %389 = vmatpush1.msra.mxu0 0.0
      %390 = vmatprep.subr.mxu0 0.0
      %391 = vmatpush1.msra.mxu0 0.0
      %392 = vmatprep.subr.mxu0 0.0
      %393 = vmatpush1.msra.mxu0 0.0
      %394 = vmatprep.subr.mxu0 0.0
      %395 = vmatpush1.msra.mxu0 0.0
      %396 = vmatprep.subr.mxu0 0.0
      %397 = vmatpush1.msra.mxu0 0.0
      %398 = vmatprep.subr.mxu0 0.0
      %399 = vmatpush1.msra.mxu0 0.0
      %400 = vmatprep.subr.mxu0 0.0
      %401 = vmatpush1.msra.mxu0 0.0
      %402 = vmatprep.subr.mxu0 0.0
      %403 = vmatpush1.msra.mxu0 0.0
      %404 = vmatprep.subr.mxu0 0.0
      %405 = vmatpush1.msra.mxu0 0.0
      %406 = vmatprep.subr.mxu0 0.0
      %407 = vmatpush1.msra.mxu0 0.0
      %408 = vmatprep.subr.mxu0 0.0
      %409 = vmatpush1.msra.mxu0 0.0
      %410 = vmatprep.subr.mxu0 0.0
      %411 = vmatpush1.msra.mxu0 0.0
      %412 = vmatprep.subr.mxu0 0.0
      %413 = vmatpush1.msra.mxu0 0.0
      %414 = vmatprep.subr.mxu0 0.0
      %415 = vmatpush1.msra.mxu0 0.0
      %416 = vmatprep.subr.mxu0 0.0
      %417 = vmatpush1.msra.mxu0 0.0
      %418 = vmatprep.mubr.f32.mxu0 0.0
      %419 = vmatmul.mubr.f32.gmra.mrb[0].mxu0 %v348
      %v420 = vpop.f32.mrb[0].mxu0
      %v421 = vadd.f32 0.0, %v420
      %v422 = vpop.f32.mrb[0].mxu0
      %423 = vdwg.mxu0
      %v425 = vsel %vm346, %v342, 0
      %v428 = vsel %vm350, %v343, 0
      %430 = vmatprep.subr.mxu0 0.0
      %431 = vmatpush1.msra.mxu0 %v428
      %432 = vmatprep.subr.mxu0 0.0
      %433 = vmatpush1.msra.mxu0 0.0
      %434 = vmatprep.subr.mxu0 0.0
      %435 = vmatpush1.msra.mxu0 0.0
      %436 = vmatprep.subr.mxu0 0.0
      %437 = vmatpush1.msra.mxu0 0.0
      %438 = vmatprep.subr.mxu0 0.0
      %439 = vmatpush1.msra.mxu0 0.0
      %440 = vmatprep.subr.mxu0 0.0
      %441 = vmatpush1.msra.mxu0 0.0
      %442 = vmatprep.subr.mxu0 0.0
      %443 = vmatpush1.msra.mxu0 0.0
      %444 = vmatprep.subr.mxu0 0.0
      %445 = vmatpush1.msra.mxu0 0.0
      %446 = vmatprep.subr.mxu0 0.0
      %447 = vmatpush1.msra.mxu0 0.0
      %448 = vmatprep.subr.mxu0 0.0
      %449 = vmatpush1.msra.mxu0 0.0
      %450 = vmatprep.subr.mxu0 0.0
      %451 = vmatpush1.msra.mxu0 0.0
      %452 = vmatprep.subr.mxu0 0.0
      %453 = vmatpush1.msra.mxu0 0.0
      %454 = vmatprep.subr.mxu0 0.0
      %455 = vmatpush1.msra.mxu0 0.0
      %456 = vmatprep.subr.mxu0 0.0
      %457 = vmatpush1.msra.mxu0 0.0
      %458 = vmatprep.subr.mxu0 0.0
      %459 = vmatpush1.msra.mxu0 0.0
      %460 = vmatprep.subr.mxu0 0.0
      %461 = vmatpush1.msra.mxu0 0.0
      %462 = vmatprep.subr.mxu0 0.0
      %463 = vmatpush1.msra.mxu0 0.0
      %464 = vmatprep.subr.mxu0 0.0
      %465 = vmatpush1.msra.mxu0 0.0
      %466 = vmatprep.subr.mxu0 0.0
      %467 = vmatpush1.msra.mxu0 0.0
      %468 = vmatprep.subr.mxu0 0.0
      %469 = vmatpush1.msra.mxu0 0.0
      %470 = vmatprep.subr.mxu0 0.0
      %471 = vmatpush1.msra.mxu0 0.0
      %472 = vmatprep.subr.mxu0 0.0
      %473 = vmatpush1.msra.mxu0 0.0
      %474 = vmatprep.subr.mxu0 0.0
      %475 = vmatpush1.msra.mxu0 0.0
      %476 = vmatprep.subr.mxu0 0.0
      %477 = vmatpush1.msra.mxu0 0.0
      %478 = vmatprep.subr.mxu0 0.0
      %479 = vmatpush1.msra.mxu0 0.0
      %480 = vmatprep.subr.mxu0 0.0
      %481 = vmatpush1.msra.mxu0 0.0
      %482 = vmatprep.subr.mxu0 0.0
      %483 = vmatpush1.msra.mxu0 0.0
      %484 = vmatprep.subr.mxu0 0.0
      %485 = vmatpush1.msra.mxu0 0.0
      %486 = vmatprep.subr.mxu0 0.0
      %487 = vmatpush1.msra.mxu0 0.0
      %488 = vmatprep.subr.mxu0 0.0
      %489 = vmatpush1.msra.mxu0 0.0
      %490 = vmatprep.subr.mxu0 0.0
      %491 = vmatpush1.msra.mxu0 0.0
      %492 = vmatprep.subr.mxu0 0.0
      %493 = vmatpush1.msra.mxu0 0.0
      %494 = vmatprep.mubr.f32.mxu0 0.0
      %495 = vmatmul.mubr.f32.gmra.mrb[0].mxu0 %v425
      %v496 = vpop.f32.mrb[0].mxu0
      %v497 = vadd.f32 %v421, %v496
      %v498 = vpop.f32.mrb[0].mxu0
      %499 = vdwg.mxu0
      %v500 = vld [vmem:[%s4] sm:$0xff]
      %502 = vset.pattern.permute.xlu0 0
      %503 = vperm.xlu0 %502, %v500
      %v504 = vpop.permute.xlu0 %503
      %v506 = vadd.f32 %v497, %v504
      %v507 = vmax.f32 %v506, 0.0
      %v508 = vld [vmem:[%s5] sm:$0xff]
      %510 = vset.pattern.permute.xlu0 0
      %511 = vperm.xlu0 %510, %v508
      %v512 = vpop.permute.xlu0 %511
      %v514 = vmul.f32 %v507, %v512
      %v515 = vrot.slane %v514, 4
      %v516 = vadd.f32 %v514, %v515
      %v517 = vrot.slane %v516, 2
      %v518 = vadd.f32 %v516, %v517
      %v519 = vrot.slane %v518, 1
      %v520 = vadd.f32 %v518, %v519
      %s521 = sld [smem:[#allocation2]]
      %v522 = vstv %s521
      %v523 = vadd.f32 %v520, %v522
      %v524 = vxor.u32 %v523, 2147483648
      %v525 = vmul.f32 %v524, 1.442695
      %v526 = vpow.pop %v525
      %v527 = vadd.f32 %v526, 1.0
      %v528 = vrcp.pop %v527
      %v529 = vmul.f32 1.0, %v528
      %v530 = vmul.f32 %v345, %v529
      %531 = vst [vmem:[%s341] sm:$0xf] %v530
      %p532 = scmp.lt.s32.totalorder %s23, 1
      %s533 = scalar_select %p532, %s23, 1
      %p534 = scmp.lt.s32.totalorder %s24, 3
      %s535 = scalar_select %p534, %s24, 3
      %s536 = smul.addr %s533, 4
      %s537 = sadd.s32 %s535, %s536
      %s538 = smul.addr %s537, 4
      %s539 = scalar_lea.vmem %s7, %s538
      // Predicated region
      $region49: #{attention_block_pallas.1} parent=47 // pred_check
        %p540 = pneg %p212
      $region50: #{attention_block_pallas.1} parent=47 // pred_check_branch
        %542 = sbr.rel (%p540) target = $region52
      $region51: #{attention_block_pallas.1} parent=47 // pred_region
        _
      $region52: #{attention_block_pallas.1} parent=47 // pred_fallthru
        _
    $region48: #{attention_block_pallas.1} parent=5 // pred_fallthru
      _
    %p543 = scmp.le.s32.totalorder 2, %s14
    // Predicated region
    $region53: #{attention_block_pallas.1} parent=5 // pred_check
      %p544 = pneg %p543
    $region54: #{attention_block_pallas.1} parent=5 // pred_check_branch
      %546 = sbr.rel (%p544) target = $region56
    $region55: #{attention_block_pallas.1} parent=5 // pred_region
      %s547 = ssub.s32 %s14, 2
      // Predicated region
      $region57: #{attention_block_pallas.1} parent=55 // pred_check
        %p548 = pneg %p218
      $region58: #{attention_block_pallas.1} parent=55 // pred_check_branch
        %550 = sbr.rel (%p548) target = $region60
      $region59: #{attention_block_pallas.1} parent=55 // pred_region
        %p551 = scmp.lt.s32.totalorder %s25, 1
        %s552 = scalar_select %p551, %s25, 1
        %p553 = scmp.lt.s32.totalorder %s26, 3
        %s554 = scalar_select %p553, %s26, 3
        %s555 = smul.addr %s552, 4
        %s556 = sadd.s32 %s554, %s555
        %s557 = smul.addr %s556, 4
        %s558 = scalar_lea.vmem %s7, %s557
      $region60: #{attention_block_pallas.1} parent=55 // pred_fallthru
        _
    $region56: #{attention_block_pallas.1} parent=5 // pred_fallthru
      _
  $region6: #{attention_block_pallas.1} parent=0 // loop_footer
    %s18 = sadd.s32 1, %s14
  $region7: #{attention_block_pallas.1} parent=0 // loop_footer_branch
    %13 = sbr.rel target = $region3
  $region8: #{attention_block_pallas.1} parent=0 // loop_exit
    _

</llo_original>
